<compile_context>
chip_gen: v7x
topology: tpu7x:2x2x1
jax: 0.10.0
libtpu: 0.0.40
codegen_flags: <defaults>
</compile_context>

<pallas_src>
from functools import partial

import jax
import jax.numpy as jnp
from jax.experimental import pallas as pl
from jax.experimental.pallas import tpu as pltpu


def _pick_tile(dim: int, target: int, align: int) -> int:
    """Largest multiple of `align` that divides `dim` and is <= target.

    Falls back to the full dim when `dim` is not `align`-aligned (a block equal
    to the full array dim always satisfies the (8,128) rule).
    """
    if dim % align != 0:
        return dim
    t = max((min(target, dim) // align) * align, align)
    while dim % t != 0:
        t -= align
    return t


def _make_vote_kernel(use_scratch: bool, slice_x: bool, tk: int):
    """Fused wide-matmul kernel body. Grid = (m, n, k), reduction k last.

    Refs per step:
      x_ref : (tm, D_in) if slice_x else (tm, tk)   compute dtype
      w_ref : (tk, tn)                              compute dtype
      b_ref : (1, tn)                               f32
      o_ref : (tm, tn)                              out dtype
      acc   : (tm, tn) f32 scratch (only when use_scratch)
    """

    def _lhs(x_ref, k):
        if slice_x:
            start = pl.multiple_of(k * tk, tk)
            return x_ref[:, pl.ds(start, tk)]
        return x_ref[...]

    if use_scratch:
        def kernel(x_ref, w_ref, b_ref, o_ref, acc_ref):
            k = pl.program_id(2)

            @pl.when(k == 0)
            def _init():
                acc_ref[...] = jnp.zeros_like(acc_ref)

            acc_ref[...] += jnp.dot(_lhs(x_ref, k), w_ref[...],
                                    preferred_element_type=jnp.float32)

            @pl.when(k == pl.num_programs(2) - 1)
            def _finalize():
                o_ref[...] = (acc_ref[...] + b_ref[...]).astype(o_ref.dtype)

        return kernel

    def kernel(x_ref, w_ref, b_ref, o_ref):
        # f32 output: accumulate straight into the resident output block.
        k = pl.program_id(2)

        @pl.when(k == 0)
        def _init():
            o_ref[...] = jnp.zeros_like(o_ref)

        o_ref[...] += jnp.dot(_lhs(x_ref, k), w_ref[...],
                              preferred_element_type=jnp.float32)

        @pl.when(k == pl.num_programs(2) - 1)
        def _finalize():
            o_ref[...] = o_ref[...] + b_ref[...]

    return kernel


def prepare_ensemble_voter_params(weights, bias, compute_dtype=jnp.bfloat16):
    """One-time parameter prep (hoisted out of the hot path).

    weights [K, D_in, D_out] -> W_wide [D_in, K*D_out]  (compute dtype, K-major cols)
    bias    [K, D_out]       -> b_wide [1, K*D_out]     (f32)
    """
    K, D_in, D_out = weights.shape
    w_wide = jnp.transpose(weights, (1, 0, 2)).reshape(D_in, K * D_out)
    w_wide = w_wide.astype(compute_dtype)
    b_wide = bias.reshape(1, K * D_out).astype(jnp.float32)
    return w_wide, b_wide


def ensemble_voter_forward(x, w_wide, b_wide, *, num_members, d_out,
                           compute_dtype=jnp.bfloat16, out_dtype=None):
    """EnsembleLearnerVoter.forward: stacked votes [K, B, D_out].

    x: [B, D_in]; w_wide: [D_in, K*D_out]; b_wide: [1, K*D_out]
    (from prepare_ensemble_voter_params).
    """
    B, D_in = x.shape
    N = w_wide.shape[1]
    K = num_members
    assert N == K * d_out, "w_wide second dim must equal num_members * d_out"
    out_dtype = x.dtype if out_dtype is None else out_dtype

    isz_c = jnp.dtype(compute_dtype).itemsize
    isz_o = jnp.dtype(out_dtype).itemsize

    x_c = x if x.dtype == compute_dtype else x.astype(compute_dtype)
    w_c = w_wide if w_wide.dtype == compute_dtype else w_wide.astype(compute_dtype)
    b_c = b_wide if b_wide.dtype == jnp.float32 else b_wide.astype(jnp.float32)

    # f32 outputs accumulate directly in the resident output block; other
    # dtypes keep a f32 VMEM scratch accumulator.
    use_scratch = jnp.dtype(out_dtype) != jnp.dtype(jnp.float32)

    # Lane-dense, member-major output straight from the kernel when possible.
    out_3d = (d_out % 128 == 0)

    # ---- VMEM budget (per-chip; leave explicit slack for compiler scratch) --
    try:
        vmem_cap = int(pltpu.get_tpu_info().vmem_capacity_bytes)
    except Exception:
        vmem_cap = 64 << 20                                  # conservative (v7x)
    budget_cap = max(vmem_cap - (24 << 20), 32 << 20)        # cap for vmem_limit
    tile_budget = max(budget_cap - (8 << 20), 24 << 20)      # cap for buffers

    # ---- Tile sizes ----------------------------------------------------------
    tm = _pick_tile(B, 512, 8)
    tk = _pick_tile(D_in, 1024, 128)
    tn = d_out if out_3d else _pick_tile(N, 1024, 128)

    def _x_resident(tm_):
        return 2 * tm_ * D_in * isz_c <= min(tile_budget // 4, 8 << 20)

    def footprint(tm_, tk_, tn_):
        xcols = D_in if _x_resident(tm_) else tk_
        f = 2 * tm_ * xcols * isz_c          # x (double-buffered)
        f += 2 * tk_ * tn_ * isz_c           # weight stream (double-buffered)
        f += 2 * 8 * tn_ * 4                 # bias (sublane-padded)
        f += 2 * tm_ * tn_ * isz_o           # output (double-buffered)
        if use_scratch:
            f += tm_ * tn_ * 4               # f32 accumulator scratch
        return f

    def _can_halve(t, align):
        return t > align and t % (2 * align) == 0

    while footprint(tm, tk, tn) > tile_budget:
        if _can_halve(tm, 8):
            tm //= 2
        elif _can_halve(tk, 128):
            tk //= 2
        elif (not out_3d) and _can_halve(tn, 128):
            tn //= 2
        else:
            break

    x_resident = _x_resident(tm)
    grid_m, grid_n, grid_k = B // tm, N // tn, D_in // tk
    slice_x = x_resident and grid_k > 1

    fp = footprint(tm, tk, tn)
    vmem_limit = max(fp + (8 << 20), 32 << 20)
    vmem_limit = min(vmem_limit, budget_cap)
    vmem_limit = max(vmem_limit, fp + (2 << 20))

    # ---- Specs ---------------------------------------------------------------
    if x_resident:
        # x streamed once: resident per batch stripe, sliced in-kernel along k.
        x_spec = pl.BlockSpec((tm, D_in), lambda m, n, k: (m, 0))
    else:
        x_spec = pl.BlockSpec((tm, tk), lambda m, n, k: (m, k))
    w_spec = pl.BlockSpec((tk, tn), lambda m, n, k: (k, n))
    b_spec = pl.BlockSpec((1, tn), lambda m, n, k: (0, n))

    if out_3d:
        out_shape = jax.ShapeDtypeStruct((K, B, d_out), out_dtype)
        out_spec = pl.BlockSpec((None, tm, d_out), lambda m, n, k: (n, m, 0))
    else:
        out_shape = jax.ShapeDtypeStruct((B, N), out_dtype)
        out_spec = pl.BlockSpec((tm, tn), lambda m, n, k: (m, n))

    scratch_shapes = [pltpu.VMEM((tm, tn), jnp.float32)] if use_scratch else []

    x_bytes = B * D_in * isz_c * (1 if x_resident else grid_n)
    cost = pl.CostEstimate(
        flops=2 * B * D_in * N + B * N,
        transcendentals=0,
        bytes_accessed=int(x_bytes + grid_m * D_in * N * isz_c
                           + grid_m * N * 4 + B * N * isz_o),
    )

    kernel = _make_vote_kernel(use_scratch, slice_x, tk)

    y = pl.pallas_call(
        kernel,
        out_shape=out_shape,
        grid_spec=pltpu.PrefetchScalarGridSpec(
            num_scalar_prefetch=0,
            grid=(grid_m, grid_n, grid_k),        # reduction axis last
            in_specs=[x_spec, w_spec, b_spec],
            out_specs=out_spec,
            scratch_shapes=scratch_shapes,
        ),
        compiler_params=pltpu.CompilerParams(
            dimension_semantics=("parallel", "parallel", "arbitrary"),
            vmem_limit_bytes=int(vmem_limit),
        ),
        cost_estimate=cost,
    )(x_c, w_c, b_c)

    if out_3d:
        return y
    # Recover member-major layout (layout plumbing only; rare fallback path).
    return y.reshape(B, K, d_out).transpose(1, 0, 2)


if __name__ == "__main__":
    # Small shapes consistent with the forward: ensemble of K linear voters.
    K, B, D_IN, D_OUT = 4, 8, 32, 128

    key = jax.random.PRNGKey(0)
    kx, kw, kb = jax.random.split(key, 3)

    x = jax.random.normal(kx, (B, D_IN), dtype=jnp.float32)
    weights = jax.random.normal(kw, (K, D_IN, D_OUT), dtype=jnp.float32) * 0.05
    bias = jax.random.normal(kb, (K, D_OUT), dtype=jnp.float32) * 0.01

    # One-time parameter prep (hoisted out of the hot path).
    w_wide, b_wide = prepare_ensemble_voter_params(weights, bias)
    w_wide, b_wide = jax.block_until_ready((w_wide, b_wide))

    fwd = jax.jit(partial(ensemble_voter_forward, num_members=K, d_out=D_OUT))
    y = fwd(x, w_wide, b_wide)
    y = jax.block_until_ready(y)

    # Reference (plain JAX) of the vote semantics using the same bf16-rounded
    # operands the kernel feeds the MXU (f32 accumulation).
    x_r = x.astype(jnp.bfloat16).astype(jnp.float32)
    w_r = weights.astype(jnp.bfloat16).astype(jnp.float32)
    ref = jnp.einsum("bi,kio->kbo", x_r, w_r) + bias[:, None, :]

    assert y.shape == (K, B, D_OUT)
    assert jnp.allclose(y, ref, atol=2e-2, rtol=2e-2)

    print("KERNEL_OK")
</pallas_src>

<mosaic_0001>
module attributes {stable_mosaic.version = 11 : i64} {
  func.func @kernel(%arg0: i32, %arg1: i32, %arg2: i32, %arg3: memref<8x32xbf16, #tpu.memory_space<vmem>>, %arg4: memref<32x128xbf16, #tpu.memory_space<vmem>>, %arg5: memref<1x128xf32, #tpu.memory_space<vmem>>, %arg6: memref<1x8x128xf32, #tpu.memory_space<vmem>>) attributes {dimension_semantics = [#tpu.dimension_semantics<parallel>, #tpu.dimension_semantics<parallel>, #tpu.dimension_semantics<arbitrary>], iteration_bounds = array<i64: 1, 4, 1>, scalar_prefetch = 0 : i64, scratch_operands = 0 : i64, tpu.core_type = #tpu.core_type<tc>, window_params = [{transform_indices = @transform_0, window_bounds = array<i64: 8, 32>}, {transform_indices = @transform_1, window_bounds = array<i64: 32, 128>}, {transform_indices = @transform_2, window_bounds = array<i64: 1, 128>}, {transform_indices = @transform_3, window_bounds = array<i64: 1, 8, 128>}]} {
    %c0_i32 = arith.constant 0 : i32
    %0 = arith.cmpi eq, %arg2, %c0_i32 : i32
    %1 = arith.extui %0 : i1 to i32
    %c0_i32_0 = arith.constant 0 : i32
    %2 = arith.cmpi ne, %1, %c0_i32_0 : i32
    scf.if %2 {
      %cst_12 = arith.constant 0.000000e+00 : f32
      %15 = vector.broadcast %cst_12 : f32 to vector<8x128xf32>
      %c0_13 = arith.constant 0 : index
      %c0_14 = arith.constant 0 : index
      %c0_15 = arith.constant 0 : index
      %16 = vector.load %arg6[%c0_13, %c0_14, %c0_15] : memref<1x8x128xf32, #tpu.memory_space<vmem>>, vector<1x8x128xf32>
      %17 = vector.shape_cast %16 : vector<1x8x128xf32> to vector<8x128xf32>
      %18 = vector.shape_cast %15 : vector<8x128xf32> to vector<1x8x128xf32>
      tpu.vector_store %arg6[%c0_13, %c0_14, %c0_15], %18 {strides = array<i32>} : memref<1x8x128xf32, #tpu.memory_space<vmem>>, vector<1x8x128xf32>,
    } else {
    }
    %c0 = arith.constant 0 : index
    %c0_1 = arith.constant 0 : index
    %c0_2 = arith.constant 0 : index
    %3 = vector.load %arg6[%c0, %c0_1, %c0_2] : memref<1x8x128xf32, #tpu.memory_space<vmem>>, vector<1x8x128xf32>
    %4 = vector.shape_cast %3 : vector<1x8x128xf32> to vector<8x128xf32>
    %c0_3 = arith.constant 0 : index
    %c0_4 = arith.constant 0 : index
    %5 = vector.load %arg3[%c0_3, %c0_4] : memref<8x32xbf16, #tpu.memory_space<vmem>>, vector<8x32xbf16>
    %c0_5 = arith.constant 0 : index
    %c0_6 = arith.constant 0 : index
    %6 = vector.load %arg4[%c0_5, %c0_6] : memref<32x128xbf16, #tpu.memory_space<vmem>>, vector<32x128xbf16>
    %cst = arith.constant dense<0.000000e+00> : vector<8x128xf32>
    %7 = tpu.matmul %5, %6, %cst {dimension_numbers = #tpu.dot_dimension_numbers<[1], [0], [0], [1], [0, 0, 1, 1], [], []>} : vector<8x32xbf16>, vector<32x128xbf16>, vector<8x128xf32> -> vector<8x128xf32>
    %8 = arith.addf %4, %7 : vector<8x128xf32>
    %c0_7 = arith.constant 0 : index
    %c0_8 = arith.constant 0 : index
    %c0_9 = arith.constant 0 : index
    %9 = vector.load %arg6[%c0_7, %c0_8, %c0_9] : memref<1x8x128xf32, #tpu.memory_space<vmem>>, vector<1x8x128xf32>
    %10 = vector.shape_cast %9 : vector<1x8x128xf32> to vector<8x128xf32>
    %11 = vector.shape_cast %8 : vector<8x128xf32> to vector<1x8x128xf32>
    tpu.vector_store %arg6[%c0_7, %c0_8, %c0_9], %11 {strides = array<i32>} : memref<1x8x128xf32, #tpu.memory_space<vmem>>, vector<1x8x128xf32>,
    %c0_i32_10 = arith.constant 0 : i32
    %12 = arith.cmpi eq, %arg2, %c0_i32_10 : i32
    %13 = arith.extui %12 : i1 to i32
    %c0_i32_11 = arith.constant 0 : i32
    %14 = arith.cmpi ne, %13, %c0_i32_11 : i32
    scf.if %14 {
      %c0_12 = arith.constant 0 : index
      %c0_13 = arith.constant 0 : index
      %c0_14 = arith.constant 0 : index
      %15 = vector.load %arg6[%c0_12, %c0_13, %c0_14] : memref<1x8x128xf32, #tpu.memory_space<vmem>>, vector<1x8x128xf32>
      %16 = vector.shape_cast %15 : vector<1x8x128xf32> to vector<8x128xf32>
      %c0_15 = arith.constant 0 : index
      %c0_16 = arith.constant 0 : index
      %17 = vector.load %arg5[%c0_15, %c0_16] : memref<1x128xf32, #tpu.memory_space<vmem>>, vector<1x128xf32>
      %18 = vector.broadcast %17 : vector<1x128xf32> to vector<8x128xf32>
      %19 = arith.addf %16, %18 : vector<8x128xf32>
      %c0_17 = arith.constant 0 : index
      %c0_18 = arith.constant 0 : index
      %c0_19 = arith.constant 0 : index
      %20 = vector.load %arg6[%c0_17, %c0_18, %c0_19] : memref<1x8x128xf32, #tpu.memory_space<vmem>>, vector<1x8x128xf32>
      %21 = vector.shape_cast %20 : vector<1x8x128xf32> to vector<8x128xf32>
      %22 = vector.shape_cast %19 : vector<8x128xf32> to vector<1x8x128xf32>
      tpu.vector_store %arg6[%c0_17, %c0_18, %c0_19], %22 {strides = array<i32>} : memref<1x8x128xf32, #tpu.memory_space<vmem>>, vector<1x8x128xf32>,
    } else {
    }
    return
  }
  func.func @transform_0(%arg0: i32, %arg1: i32, %arg2: i32) -> (i32, i32) {
    %c0_i32 = arith.constant 0 : i32
    %c0_i32_0 = arith.constant 0 : i32
    return %arg0, %c0_i32 : i32, i32
  }
  func.func @transform_1(%arg0: i32, %arg1: i32, %arg2: i32) -> (i32, i32) {
    %c0_i32 = arith.constant 0 : i32
    return %arg2, %arg1 : i32, i32
  }
  func.func @transform_2(%arg0: i32, %arg1: i32, %arg2: i32) -> (i32, i32) {
    %c0_i32 = arith.constant 0 : i32
    %c0_i32_0 = arith.constant 0 : i32
    return %c0_i32, %arg1 : i32, i32
  }
  func.func @transform_3(%arg0: i32, %arg1: i32, %arg2: i32) -> (i32, i32, i32) {
    %c0_i32 = arith.constant 0 : i32
    %c0_i32_0 = arith.constant 0 : i32
    return %arg1, %arg0, %c0_i32 : i32, i32, i32
  }
}

</mosaic_0001>

<llo_original>
// kernel: ensemble_voter_forward.1
$region0: #{ensemble_voter_forward.1}
  #allocation0 [shape = 'u32[]', space=smem, size = 0x4, offset = 0x4, fixed_abs, tag = 'smem constant byte address 0x4 - core index']
  #allocation1 [shape = 'u32[144,128]{1,0:T(1,128)}', space=vmem, size = 0x12000, scoped, tag = 'internal scratch']
  %s0 = inlined_call_operand.vmem [shape: bf16[8,32], index: 0, kind: input, shape index: {}]
  %s1 = inlined_call_operand.hbm [shape: bf16[32,512], index: 1, kind: input, shape index: {}]
  %s2 = inlined_call_operand.vmem [shape: f32[1,512], index: 2, kind: input, shape index: {}]
  %s3 = inlined_call_operand.hbm [shape: f32[4,8,128], index: 3, kind: output, shape index: {}]
  %s4 = sld [smem:[#allocation0]]
  $region57: #{ensemble_voter_forward.1} parent=0
    _
  %s6 = ssub.s32 1, %s4
  %s7 = scalar_select 0, %s6, %s4
  $region1: #{ensemble_voter_forward.1} parent=0
    #allocation2 [shape = 'u8[16384]{0}', space=vmem, size = 0x4000, scoped, tag = 'input window, operand 1']
    #allocation3 [shape = 's32[2]{0}', space=sflag, size = 0x8, scoped, tag = 'scoped memory for ensemble_voter_forward.1']
    #allocation4 [shape = 's32[2]{0}', space=sflag, size = 0x8, scoped, tag = 'scoped memory for ensemble_voter_forward.1']
    #allocation5 [shape = 'u8[8192]{0}', space=vmem, size = 0x2000, scoped, tag = 'output window, operand 0']
    %8 = vsyncpa [#allocation3], 0
    %s9 = scalar_lea.sflag [#allocation3], 1
    %10 = vsyncpa %s9, 0
    %11 = vsyncpa [#allocation4], 0
    %s12 = scalar_lea.sflag [#allocation4], 1
    %13 = vsyncpa %s12, 0
    loop: start=0, step=1, limit=6
    $region2: #{ensemble_voter_forward.1} parent=1 // loop_pre_header
      _
    $region3: #{ensemble_voter_forward.1} parent=1 // loop_header
      %s15 = sphi 0, %s19
      %p16 = scmp.ge.s32.totalorder %s15, 6
      %s22 = sphi 0, %s41
      %s23 = sphi 0, %s37
      %s24 = sphi 0, %s33
      %s25 = sphi 0, %s22
      %s26 = sphi 0, %s23
      %s27 = sphi 0, %s24
      %s28 = sphi 0, %s25
      %s29 = sphi 0, %s26
      %s30 = sphi 0, %s27
      %s44 = sphi 0, %s46
      %s47 = sphi 0, %s44
      %s48 = sphi 0, %s47
      %s64 = sphi 0, %s48
      %s72 = sphi 0, %s74
      %s75 = sphi 0, %s72
      %s76 = sphi 0, %s75
      %s92 = sphi 0, %s76
      %s98 = sphi 0, %s100
      %s101 = sphi 0, %s98
      %s102 = sphi 0, %s101
      %s118 = sphi 0, %s102
      %s126 = sphi 0, %s128
      %s129 = sphi 0, %s126
      %s130 = sphi 0, %s129
      %s146 = sphi 0, %s130
    $region4: #{ensemble_voter_forward.1} parent=1 // loop_header_branch
      %18 = sbr.rel (%p16) target = $region8
    $region5: #{ensemble_voter_forward.1} parent=1 // loop_body
      %s20 = ssub.s32 %s15, 1
      %s21 = ssub.s32 %s15, 2
      %s31 = sadd.s32 1, %s24
      %p32 = scmp.ge.s32.totalorder %s31, 1
      %s33 = scalar_select %p32, 0, %s31
      %s34 = sadd.s32 1, %s23
      %s35 = scalar_select %p32, %s34, %s23
      %p36 = scmp.ge.s32.totalorder %s35, 4
      %s37 = scalar_select %p36, 0, %s35
      %s38 = sadd.s32 1, %s22
      %s39 = scalar_select %p36, %s38, %s22
      %p40 = scmp.ge.s32.totalorder %s39, 1
      %s41 = scalar_select %p40, 0, %s39
      %s42 = ssub.s32 %s22, %s41
      %p43 = scmp.eq.s32.totalorder %s42, 0
      %s45 = sadd.s32 %s44, 1
      %s46 = scalar_select %p43, %s44, %s45
      %p49 = pneg %p43
      %p50 = scmp.eq.s32.totalorder %s15, 3
      %p51 = por %p49, %p50
      %p52 = scmp.ne.s32.totalorder %s44, %s47
      %p53 = scmp.eq.s32.totalorder %s15, 0
      %p54 = por %p52, %p53
      %p55 = scmp.ne.s32.totalorder %s44, %s47
      %p56 = scmp.eq.s32.totalorder %s20, 3
      %p57 = por %p55, %p56
      %p58 = scmp.ne.s32.totalorder %s47, %s48
      %p59 = scmp.eq.s32.totalorder %s20, 0
      %p60 = por %p58, %p59
      %p61 = scmp.ne.s32.totalorder %s47, %s48
      %p62 = scmp.eq.s32.totalorder %s21, 3
      %p63 = por %p61, %p62
      %p65 = scmp.ne.s32.totalorder %s48, %s64
      %p66 = scmp.eq.s32.totalorder %s21, 0
      %p67 = por %p65, %p66
      %s68 = ssub.s32 %s24, %s33
      %s69 = ssub.s32 %s23, %s37
      %s70 = sor.u32 %s68, %s69
      %p71 = scmp.eq.s32.totalorder %s70, 0
      %s73 = sadd.s32 %s72, 1
      %s74 = scalar_select %p71, %s72, %s73
      %p77 = pneg %p71
      %p78 = scmp.eq.s32.totalorder %s15, 3
      %p79 = por %p77, %p78
      %p80 = scmp.ne.s32.totalorder %s72, %s75
      %p81 = scmp.eq.s32.totalorder %s15, 0
      %p82 = por %p80, %p81
      %p83 = scmp.ne.s32.totalorder %s72, %s75
      %p84 = scmp.eq.s32.totalorder %s20, 3
      %p85 = por %p83, %p84
      %p86 = scmp.ne.s32.totalorder %s75, %s76
      %p87 = scmp.eq.s32.totalorder %s20, 0
      %p88 = por %p86, %p87
      %p89 = scmp.ne.s32.totalorder %s75, %s76
      %p90 = scmp.eq.s32.totalorder %s21, 3
      %p91 = por %p89, %p90
      %p93 = scmp.ne.s32.totalorder %s76, %s92
      %p94 = scmp.eq.s32.totalorder %s21, 0
      %p95 = por %p93, %p94
      %s96 = ssub.s32 %s23, %s37
      %p97 = scmp.eq.s32.totalorder %s96, 0
      %s99 = sadd.s32 %s98, 1
      %s100 = scalar_select %p97, %s98, %s99
      %p103 = pneg %p97
      %p104 = scmp.eq.s32.totalorder %s15, 3
      %p105 = por %p103, %p104
      %p106 = scmp.ne.s32.totalorder %s98, %s101
      %p107 = scmp.eq.s32.totalorder %s15, 0
      %p108 = por %p106, %p107
      %p109 = scmp.ne.s32.totalorder %s98, %s101
      %p110 = scmp.eq.s32.totalorder %s20, 3
      %p111 = por %p109, %p110
      %p112 = scmp.ne.s32.totalorder %s101, %s102
      %p113 = scmp.eq.s32.totalorder %s20, 0
      %p114 = por %p112, %p113
      %p115 = scmp.ne.s32.totalorder %s101, %s102
      %p116 = scmp.eq.s32.totalorder %s21, 3
      %p117 = por %p115, %p116
      %p119 = scmp.ne.s32.totalorder %s102, %s118
      %p120 = scmp.eq.s32.totalorder %s21, 0
      %p121 = por %p119, %p120
      %s122 = ssub.s32 %s23, %s37
      %s123 = ssub.s32 %s22, %s41
      %s124 = sor.u32 %s122, %s123
      %p125 = scmp.eq.s32.totalorder %s124, 0
      %s127 = sadd.s32 %s126, 1
      %s128 = scalar_select %p125, %s126, %s127
      %p131 = pneg %p125
      %p132 = scmp.eq.s32.totalorder %s15, 3
      %p133 = por %p131, %p132
      %p134 = scmp.ne.s32.totalorder %s126, %s129
      %p135 = scmp.eq.s32.totalorder %s15, 0
      %p136 = por %p134, %p135
      %p137 = scmp.ne.s32.totalorder %s126, %s129
      %p138 = scmp.eq.s32.totalorder %s20, 3
      %p139 = por %p137, %p138
      %p140 = scmp.ne.s32.totalorder %s129, %s130
      %p141 = scmp.eq.s32.totalorder %s20, 0
      %p142 = por %p140, %p141
      %p143 = scmp.ne.s32.totalorder %s129, %s130
      %p144 = scmp.eq.s32.totalorder %s21, 3
      %p145 = por %p143, %p144
      %p147 = scmp.ne.s32.totalorder %s130, %s146
      %p148 = scmp.eq.s32.totalorder %s21, 0
      %p149 = por %p147, %p148
      %p150 = scmp.le.s32.totalorder 1, %s15
      %p151 = scmp.lt.s32.totalorder %s15, 5
      %p152 = pnand %p150, %p151
      %p153 = pneg %p152
      // Predicated region
      $region9: #{ensemble_voter_forward.1} parent=5 // pred_check
        _
      $region10: #{ensemble_voter_forward.1} parent=5 // pred_check_branch
        %155 = sbr.rel (%p152) target = $region12
      $region11: #{ensemble_voter_forward.1} parent=5 // pred_region
        %s156 = ssub.s32 %s15, 1
        // Predicated region
        $region13: #{ensemble_voter_forward.1} parent=11 // pred_check
          %p157 = pneg %p60
        $region14: #{ensemble_voter_forward.1} parent=11 // pred_check_branch
          %159 = sbr.rel (%p157) target = $region16
        $region15: #{ensemble_voter_forward.1} parent=11 // pred_region
          %p160 = scmp.lt.s32.totalorder %s25, 0
          %s161 = scalar_select %p160, %s25, 0
          %s162 = smul.addr %s161, 4
          %s163 = scalar_lea.vmem %s0, %s162
        $region16: #{ensemble_voter_forward.1} parent=11 // pred_fallthru
          _
      $region12: #{ensemble_voter_forward.1} parent=5 // pred_fallthru
        _
      %p164 = scmp.lt.s32.totalorder %s15, 4
      // Predicated region
      $region17: #{ensemble_voter_forward.1} parent=5 // pred_check
        %p165 = pneg %p164
      $region18: #{ensemble_voter_forward.1} parent=5 // pred_check_branch
        %167 = sbr.rel (%p165) target = $region20
      $region19: #{ensemble_voter_forward.1} parent=5 // pred_region
        // Predicated region
        $region21: #{ensemble_voter_forward.1} parent=19 // pred_check
          %p168 = pneg %p82
        $region22: #{ensemble_voter_forward.1} parent=19 // pred_check_branch
          %170 = sbr.rel (%p168) target = $region24
        $region23: #{ensemble_voter_forward.1} parent=19 // pred_region
          %s171 = sand.u32 %s72, 1
          %s172 = scalar_lea.sflag [#allocation3], %s171
          %s173 = sand.u32 %s72, 1
          %s174 = smul.addr %s173, 16
          %s175 = scalar_lea.vmem [#allocation2], %s174
          %s176 = smul.u32 4, %s24
          %s178 = ssub.s32 256, 256
          %179 = vsyncadd %s172, %s178
          %s180 = smul.addr %s176, 4
          %s181 = sadd.s32 %s23, %s180
          %s182 = smul.addr %s181, 64
          %s183 = scalar_lea.hbm %s1, %s182
          %s184 = sshll.u32 %s175, 4
          %s185 = int_to_ptr.vmem [resolvable:$true] %s184
          %190 = dma.hbm_to_vmem [thread:$0]  %s183, 256, %s185, %s172, 256, 64, 4
        $region24: #{ensemble_voter_forward.1} parent=19 // pred_fallthru
          _
        // Predicated region
        $region25: #{ensemble_voter_forward.1} parent=19 // pred_check
          %p191 = pneg %p108
        $region26: #{ensemble_voter_forward.1} parent=19 // pred_check_branch
          %193 = sbr.rel (%p191) target = $region28
        $region27: #{ensemble_voter_forward.1} parent=19 // pred_region
          %p194 = scmp.lt.s32.totalorder %s23, 3
          %s195 = scalar_select %p194, %s23, 3
          %s196 = scalar_lea.vmem %s2, %s195
        $region28: #{ensemble_voter_forward.1} parent=19 // pred_fallthru
          _
      $region20: #{ensemble_voter_forward.1} parent=5 // pred_fallthru
        _
      %p197 = scmp.le.s32.totalorder 1, %s15
      %p198 = scmp.lt.s32.totalorder %s15, 5
      %p199 = pnand %p197, %p198
      %p200 = pneg %p199
      // Predicated region
      $region29: #{ensemble_voter_forward.1} parent=5 // pred_check
        _
      $region30: #{ensemble_voter_forward.1} parent=5 // pred_check_branch
        %202 = sbr.rel (%p199) target = $region32
      $region31: #{ensemble_voter_forward.1} parent=5 // pred_region
        %s203 = ssub.s32 %s15, 1
        %s204 = sand.u32 %s75, 1
        %s205 = scalar_lea.sflag [#allocation3], %s204
        %s206 = sand.u32 %s75, 1
        %s207 = smul.addr %s206, 16
        %s208 = scalar_lea.vmem [#allocation2], %s207
        // Predicated region
        $region33: #{ensemble_voter_forward.1} parent=31 // pred_check
          %p209 = pneg %p88
        $region34: #{ensemble_voter_forward.1} parent=31 // pred_check_branch
          %211 = sbr.rel (%p209) target = $region36
        $region35: #{ensemble_voter_forward.1} parent=31 // pred_region
          %212 = dma.done %s205, 256
        $region36: #{ensemble_voter_forward.1} parent=31 // pred_fallthru
          _
        %p213 = scmp.lt.s32.totalorder %s25, 0
        %s214 = scalar_select %p213, %s25, 0
        %s215 = smul.addr %s214, 4
        %s216 = scalar_lea.vmem %s0, %s215
        %p217 = pneg %p60
        %p218 = pneg %p57
        %s219 = sand.u32 %s75, 1
        %s220 = scalar_lea.sflag [#allocation3], %s219
        %s221 = sand.u32 %s75, 1
        %s222 = smul.addr %s221, 16
        %s223 = scalar_lea.vmem [#allocation2], %s222
        %p224 = pneg %p88
        %p225 = pneg %p85
        %p226 = scmp.lt.s32.totalorder %s26, 3
        %s227 = scalar_select %p226, %s26, 3
        %s228 = scalar_lea.vmem %s2, %s227
        %p229 = pneg %p114
        %p230 = pneg %p111
        %p231 = pneg %p142
        %p232 = pneg %p139
        %s233 = sand.u32 %s129, 1
        %s234 = scalar_lea.sflag [#allocation4], %s233
        %s235 = sand.u32 %s129, 1
        %s236 = smul.addr %s235, 8
        %s237 = scalar_lea.vmem [#allocation5], %s236
        %p238 = scmp.lt.s32.totalorder %s25, 0
        %s239 = scalar_select %p238, %s25, 0
        %s240 = smul.addr %s239, 4
        %s241 = scalar_lea.vmem %s0, %s240
        %s242 = smul.u32 4, %s27
        %p243 = scmp.lt.s32.totalorder %s26, 3
        %s244 = scalar_select %p243, %s26, 3
        %s245 = scalar_lea.vmem %s2, %s244
        %p247 = scmp.eq.s32.totalorder %s27, 0
        // Predicated region
        $region37: #{ensemble_voter_forward.1} parent=31 // pred_check
          %p248 = pneg %p247
        $region38: #{ensemble_voter_forward.1} parent=31 // pred_check_branch
          %250 = sbr.rel (%p248) target = $region40
        $region39: #{ensemble_voter_forward.1} parent=31 // pred_region
          %251 = vst [vmem:[%s237] sm:$0xff] 0.0
        $region40: #{ensemble_voter_forward.1} parent=31 // pred_fallthru
          _
        %v252 = vld [vmem:[%s237] sm:$0xff]
        %v253 = vld [vmem:[%s241] sm:$0xf]
        %v254 = vld [vmem:[%s208] sm:$0xf]
        %v255 = vld [vmem:[%s208 + $0x4] sm:$0xf]
        %v256 = vld [vmem:[%s208 + $0x8] sm:$0xf]
        %v257 = vld [vmem:[%s208 + $0xc] sm:$0xf]
        %v262 = vunpack.c.l.b16 %v254
        %v263 = vunpack.c.l.b16 %v255
        %v264 = vunpack.c.l.b16 %v256
        %v265 = vunpack.c.l.b16 %v257
        %v266 = vpack.c.b16 %v263, %v262
        %v267 = vpack.c.b16 %v265, %v264
        %vm270 = vcmask 261120
        %v272 = vsel %vm270, %v253, 0
        %274 = vmatprep.subr.bf16.mxu0 0
        %275 = vmatpush1.bf16.msra.mxu0 %v266
        %276 = vmatprep.subr.bf16.mxu0 0
        %277 = vmatpush1.bf16.msra.mxu0 %v267
        %278 = vmatprep.subr.bf16.mxu0 0
        %279 = vmatpush1.bf16.msra.mxu0 0
        %280 = vmatprep.subr.bf16.mxu0 0
        %281 = vmatpush1.bf16.msra.mxu0 0
        %282 = vmatprep.subr.bf16.mxu0 0
        %283 = vmatpush1.bf16.msra.mxu0 0
        %284 = vmatprep.subr.bf16.mxu0 0
        %285 = vmatpush1.bf16.msra.mxu0 0
        %286 = vmatprep.subr.bf16.mxu0 0
        %287 = vmatpush1.bf16.msra.mxu0 0
        %288 = vmatprep.subr.bf16.mxu0 0
        %289 = vmatpush1.bf16.msra.mxu0 0
        %290 = vmatprep.subr.bf16.mxu0 0
        %291 = vmatpush1.bf16.msra.mxu0 0
        %292 = vmatprep.subr.bf16.mxu0 0
        %293 = vmatpush1.bf16.msra.mxu0 0
        %294 = vmatprep.subr.bf16.mxu0 0
        %295 = vmatpush1.bf16.msra.mxu0 0
        %296 = vmatprep.subr.bf16.mxu0 0
        %297 = vmatpush1.bf16.msra.mxu0 0
        %298 = vmatprep.subr.bf16.mxu0 0
        %299 = vmatpush1.bf16.msra.mxu0 0
        %300 = vmatprep.subr.bf16.mxu0 0
        %301 = vmatpush1.bf16.msra.mxu0 0
        %302 = vmatprep.subr.bf16.mxu0 0
        %303 = vmatpush1.bf16.msra.mxu0 0
        %304 = vmatprep.subr.bf16.mxu0 0
        %305 = vmatpush1.bf16.msra.mxu0 0
        %306 = vmatprep.mubr.bf16.mxu0 0
        %307 = vmatmul.mubr.bf16.gmra.mrb[0].mxu0 %v272
        %v308 = vpop.f32.mrb[0].mxu0
        %v309 = vadd.f32 0.0, %v308
        %v310 = vpop.f32.mrb[0].mxu0
        %v311 = vpop.f32.mrb[0].mxu0
        %v312 = vpop.f32.mrb[0].mxu0
        %313 = vdwg.mxu0
        %v314 = vadd.f32 %v252, %v309
        %315 = vst [vmem:[%s237] sm:$0xff] %v314
        // Predicated region
        $region41: #{ensemble_voter_forward.1} parent=31 // pred_check
          %p316 = pneg %p247
        $region42: #{ensemble_voter_forward.1} parent=31 // pred_check_branch
          %318 = sbr.rel (%p316) target = $region44
        $region43: #{ensemble_voter_forward.1} parent=31 // pred_region
          %v319 = vld [vmem:[%s237] sm:$0xff]
          %v320 = vld [vmem:[%s245] sm:$0x1]
          %v322 = vlaneseq
          %v323 = vshrl.u32 %v322, 7
          %v324 = vsub.s32 0, %v323
          %v325 = vrot.slane %v320, %v324
          %v327 = vadd.f32 %v319, %v325
          %328 = vst [vmem:[%s237] sm:$0xff] %v327
        $region44: #{ensemble_voter_forward.1} parent=31 // pred_fallthru
          _
        %s329 = sand.u32 %s129, 1
        %s330 = scalar_lea.sflag [#allocation4], %s329
        %s331 = sand.u32 %s129, 1
        %s332 = smul.addr %s331, 8
        %s333 = scalar_lea.vmem [#allocation5], %s332
        // Predicated region
        $region45: #{ensemble_voter_forward.1} parent=31 // pred_check
          %p334 = pneg %p139
        $region46: #{ensemble_voter_forward.1} parent=31 // pred_check_branch
          %336 = sbr.rel (%p334) target = $region48
        $region47: #{ensemble_voter_forward.1} parent=31 // pred_region
          %s338 = ssub.s32 128, 128
          %339 = vsyncadd %s330, %s338
          %s340 = sadd.s32 %s25, %s26
          %s341 = smul.addr %s340, 128
          %s342 = scalar_lea.hbm %s3, %s341
          %s344 = sshll.u32 %s333, 4
          %s345 = int_to_ptr.vmem [resolvable:$true] %s344
          %347 = dma.vmem_to_hbm [thread:$0]  %s345, 128, %s342, %s330
        $region48: #{ensemble_voter_forward.1} parent=31 // pred_fallthru
          _
      $region32: #{ensemble_voter_forward.1} parent=5 // pred_fallthru
        _
      %p348 = scmp.le.s32.totalorder 2, %s15
      // Predicated region
      $region49: #{ensemble_voter_forward.1} parent=5 // pred_check
        %p349 = pneg %p348
      $region50: #{ensemble_voter_forward.1} parent=5 // pred_check_branch
        %351 = sbr.rel (%p349) target = $region52
      $region51: #{ensemble_voter_forward.1} parent=5 // pred_region
        %s352 = ssub.s32 %s15, 2
        // Predicated region
        $region53: #{ensemble_voter_forward.1} parent=51 // pred_check
          %p353 = pneg %p145
        $region54: #{ensemble_voter_forward.1} parent=51 // pred_check_branch
          %355 = sbr.rel (%p353) target = $region56
        $region55: #{ensemble_voter_forward.1} parent=51 // pred_region
          %s356 = sand.u32 %s130, 1
          %s357 = scalar_lea.sflag [#allocation4], %s356
          %s358 = sand.u32 %s130, 1
          %s359 = smul.addr %s358, 8
          %s360 = scalar_lea.vmem [#allocation5], %s359
          %361 = dma.done %s357, 128
        $region56: #{ensemble_voter_forward.1} parent=51 // pred_fallthru
          _
      $region52: #{ensemble_voter_forward.1} parent=5 // pred_fallthru
        _
    $region6: #{ensemble_voter_forward.1} parent=1 // loop_footer
      %s19 = sadd.s32 1, %s15
    $region7: #{ensemble_voter_forward.1} parent=1 // loop_footer_branch
      %14 = sbr.rel target = $region3
    $region8: #{ensemble_voter_forward.1} parent=1 // loop_exit
      _
    %362 = vsyncpa [#allocation3], 1
    %s363 = scalar_lea.sflag [#allocation3], 1
    %364 = vsyncpa %s363, 1
    %365 = vsyncpa [#allocation4], 1
    %s366 = scalar_lea.sflag [#allocation4], 1
    %367 = vsyncpa %s366, 1

</llo_original>
